<compile_context>
chip_gen: v6e
topology: v6e:2x2x1
jax: 0.10.0
libtpu: 0.0.40
codegen_flags: <defaults>
</compile_context>

<pallas_src>
import jax
import jax.numpy as jnp
from jax.experimental import pallas as pl
from jax.experimental.pallas import tpu as pltpu


def _norm_kernel(x_ref, mean_ref, inv_ref, o_ref):
    # x_ref/o_ref: (tb, td) in x dtype; mean_ref/inv_ref: (1, td) float32,
    # broadcast over the rows of the block.
    xf = x_ref[...].astype(jnp.float32)
    o_ref[...] = ((xf - mean_ref[...]) * inv_ref[...]).astype(o_ref.dtype)


def _cdiv(a: int, b: int) -> int:
    return -(-a // b)


def _round_up(n: int, m: int) -> int:
    return _cdiv(n, m) * m


def _round_down(n: int, m: int) -> int:
    return (n // m) * m


def normalization_layer(x: jax.Array, mean: jax.Array, std: jax.Array) -> jax.Array:
    """Pallas equivalent of NormalizationLayer.forward: (x - mean) / std.

    x: (..., D); mean, std: (D,) broadcast over all leading dims.
    """
    *lead, D = x.shape
    assert mean.shape == (D,) and std.shape == (D,)

    # Flatten leading dims into a single batch axis.
    B = 1
    for s in lead:
        B *= s
    if B == 0:  # degenerate empty batch: nothing to stream.
        return ((x.astype(jnp.float32) - mean) / std).astype(x.dtype)

    x2 = x.reshape(B, D)
    dtype = x2.dtype
    itemsize = jnp.dtype(dtype).itemsize
    # Sublane packing: 8 rows for 4-byte, 16 for 2-byte, 32 for 1-byte dtypes.
    row_align = max(8, 32 // itemsize)

    # Per-feature stats kept in f32 (tiny (D,) vectors, matches the torch
    # reference which broadcasts the stored f32 statistics); the reciprocal
    # is computed once here so the kernel does no per-step divides.
    mean2 = mean.astype(jnp.float32).reshape(1, D)
    inv2 = (1.0 / std.astype(jnp.float32)).reshape(1, D)

    # ---- Feature (lane) tiling ---------------------------------------------
    MAX_TD = 4096
    if D <= MAX_TD:
        td = D                      # full-dim block: legal even if D % 128 != 0
    else:
        # Balanced, 128-aligned tiles; the cdiv grid masks the (<128 lane) edge.
        td = _round_up(_cdiv(D, _cdiv(D, MAX_TD)), 128)
    n_feat = _cdiv(D, td)

    # ---- Batch (sublane) tiling --------------------------------------------
    X_BLOCK_BUDGET = 4 * 1024 * 1024            # bytes per x block
    MAX_TB = 8192
    tb = X_BLOCK_BUDGET // (td * itemsize)
    tb = min(tb, MAX_TB, _round_up(B, row_align))
    tb = max(row_align, _round_down(tb, row_align))
    # v7x megacore: make sure the "parallel" batch axis has >= 2 grid steps
    # whenever the batch is big enough, so both TensorCores stream data.
    if _cdiv(B, tb) == 1 and B >= 2 * row_align:
        tb = max(row_align, _round_down(_cdiv(B, 2), row_align))
    n_batch = _cdiv(B, tb)

    # ---- Grid / BlockSpecs ---------------------------------------------------
    if n_feat == 1:
        grid = (n_batch,)
        in_specs = [
            pl.BlockSpec((tb, td), lambda i: (i, 0)),
            pl.BlockSpec((1, td), lambda i: (0, 0)),
            pl.BlockSpec((1, td), lambda i: (0, 0)),
        ]
        out_specs = pl.BlockSpec((tb, td), lambda i: (i, 0))
        dim_sem = ("parallel",)
    else:
        # Feature axis OUTER so the (1, td) stat blocks stay constant across
        # the inner (batch) loop and are not re-DMA'd every step.
        grid = (n_feat, n_batch)
        in_specs = [
            pl.BlockSpec((tb, td), lambda j, i: (i, j)),
            pl.BlockSpec((1, td), lambda j, i: (0, j)),
            pl.BlockSpec((1, td), lambda j, i: (0, j)),
        ]
        out_specs = pl.BlockSpec((tb, td), lambda j, i: (i, j))
        dim_sem = ("parallel", "parallel")

    # ---- VMEM budget: double-buffered x/out blocks + stat rows + f32 temp. --
    block_bytes = tb * td * itemsize
    f32_tmp_bytes = tb * td * 4 if itemsize < 4 else 0   # in-kernel upcast temp
    stat_bytes = td * 4
    vmem_need = 2 * 2 * block_bytes + 2 * 2 * stat_bytes + f32_tmp_bytes
    try:
        vmem_cap = int(pltpu.get_tpu_info().vmem_capacity_bytes)
    except Exception:
        vmem_cap = 64 * 1024 * 1024             # conservative (v7x physical)
    vmem_limit = int(min(vmem_cap // 2, max(16 * 1024 * 1024, 2 * vmem_need)))

    out = pl.pallas_call(
        _norm_kernel,
        out_shape=jax.ShapeDtypeStruct((B, D), dtype),
        grid_spec=pltpu.PrefetchScalarGridSpec(
            num_scalar_prefetch=0,
            grid=grid,
            in_specs=in_specs,
            out_specs=out_specs,
        ),
        compiler_params=pltpu.CompilerParams(
            dimension_semantics=dim_sem,
            vmem_limit_bytes=vmem_limit,
        ),
    )(x2, mean2, inv2)

    return out.reshape(x.shape)


if __name__ == "__main__":
    key = jax.random.PRNGKey(0)
    kx, km, ks = jax.random.split(key, 3)

    # Small CBM-like shapes; B and D deliberately not tile-aligned so the
    # cdiv-grid masked edge blocks are exercised (no padding anywhere).
    B, D = 10, 96
    x = jax.random.normal(kx, (B, D), dtype=jnp.float32)
    # Deterministic "trained" statistics (would normally come from data).
    mean = jax.random.normal(km, (D,), dtype=jnp.float32)
    std = jax.random.uniform(ks, (D,), dtype=jnp.float32, minval=0.5, maxval=2.0)

    out = jax.block_until_ready(normalization_layer(x, mean, std))

    # Reference check against plain JAX broadcasting semantics (same as torch).
    ref = (x - mean[None, :]) / std[None, :]
    assert out.shape == (B, D)
    assert jnp.allclose(out, ref, atol=1e-5, rtol=1e-5)

    print("KERNEL_OK")
</pallas_src>

<mosaic_0001>
module attributes {stable_mosaic.version = 11 : i64} {
  func.func @_norm_kernel(%arg0: i32, %arg1: memref<16x96xf32, #tpu.memory_space<vmem>>, %arg2: memref<1x96xf32, #tpu.memory_space<vmem>>, %arg3: memref<1x96xf32, #tpu.memory_space<vmem>>, %arg4: memref<16x96xf32, #tpu.memory_space<vmem>>) attributes {dimension_semantics = [#tpu.dimension_semantics<parallel>], iteration_bounds = array<i64: 1>, scalar_prefetch = 0 : i64, scratch_operands = 0 : i64, tpu.core_type = #tpu.core_type<tc>, window_params = [{transform_indices = @transform_0, window_bounds = array<i64: 16, 96>}, {pipeline_mode = #tpu.pipeline_mode<synchronous>, transform_indices = @transform_1, window_bounds = array<i64: 1, 96>}, {pipeline_mode = #tpu.pipeline_mode<synchronous>, transform_indices = @transform_2, window_bounds = array<i64: 1, 96>}, {transform_indices = @transform_3, window_bounds = array<i64: 16, 96>}]} {
    %c0 = arith.constant 0 : index
    %c0_0 = arith.constant 0 : index
    %0 = vector.load %arg1[%c0, %c0_0] : memref<16x96xf32, #tpu.memory_space<vmem>>, vector<16x96xf32>
    %c0_1 = arith.constant 0 : index
    %c0_2 = arith.constant 0 : index
    %1 = vector.load %arg2[%c0_1, %c0_2] : memref<1x96xf32, #tpu.memory_space<vmem>>, vector<1x96xf32>
    %2 = vector.broadcast %1 : vector<1x96xf32> to vector<16x96xf32>
    %3 = arith.subf %0, %2 : vector<16x96xf32>
    %c0_3 = arith.constant 0 : index
    %c0_4 = arith.constant 0 : index
    %4 = vector.load %arg3[%c0_3, %c0_4] : memref<1x96xf32, #tpu.memory_space<vmem>>, vector<1x96xf32>
    %5 = vector.broadcast %4 : vector<1x96xf32> to vector<16x96xf32>
    %6 = arith.mulf %3, %5 : vector<16x96xf32>
    %c0_5 = arith.constant 0 : index
    %c0_6 = arith.constant 0 : index
    %7 = vector.load %arg4[%c0_5, %c0_6] : memref<16x96xf32, #tpu.memory_space<vmem>>, vector<16x96xf32>
    tpu.vector_store %arg4[%c0_5, %c0_6], %6 {strides = array<i32>} : memref<16x96xf32, #tpu.memory_space<vmem>>, vector<16x96xf32>,
    return
  }
  func.func @transform_0(%arg0: i32) -> (i32, i32) {
    %c0_i32 = arith.constant 0 : i32
    %c0_i32_0 = arith.constant 0 : i32
    return %arg0, %c0_i32 : i32, i32
  }
  func.func @transform_1(%arg0: i32) -> (i32, i32) {
    %c0_i32 = arith.constant 0 : i32
    %c0_i32_0 = arith.constant 0 : i32
    %c0_i32_1 = arith.constant 0 : i32
    return %c0_i32, %c0_i32_0 : i32, i32
  }
  func.func @transform_2(%arg0: i32) -> (i32, i32) {
    %c0_i32 = arith.constant 0 : i32
    %c0_i32_0 = arith.constant 0 : i32
    %c0_i32_1 = arith.constant 0 : i32
    return %c0_i32, %c0_i32_0 : i32, i32
  }
  func.func @transform_3(%arg0: i32) -> (i32, i32) {
    %c0_i32 = arith.constant 0 : i32
    %c0_i32_0 = arith.constant 0 : i32
    return %arg0, %c0_i32 : i32, i32
  }
}

</mosaic_0001>

<llo_original>
// kernel: tpu_custom_call.1
$region0: #{tpu_custom_call.1}
  #allocation0 [shape = 'u32[]', space=smem, size = 0x4, offset = 0x4, fixed_abs, tag = 'smem constant byte address 0x4 - core index']
  #allocation1 [shape = 'u32[144,128]{1,0:T(1,128)}', space=vmem, size = 0x12000, scoped, tag = 'internal scratch']
  %s0 = inlined_call_operand.hbm [shape: f32[10,96], index: 0, kind: input, shape index: {}]
  %s1 = inlined_call_operand.vmem [shape: f32[1,96], index: 1, kind: input, shape index: {}]
  %s2 = inlined_call_operand.vmem [shape: f32[1,96], index: 2, kind: input, shape index: {}]
  %s3 = inlined_call_operand.hbm [shape: f32[10,96], index: 3, kind: output, shape index: {}]
  %s4 = sld [smem:[#allocation0]]
  $region26: #{tpu_custom_call.1} parent=0
    _
  %s6 = ssub.s32 1, %s4
  %s7 = scalar_select 0, %s6, %s4
  $region1: #{tpu_custom_call.1} parent=0
    #allocation2 [shape = 'u8[8192]{0}', space=vmem, size = 0x2000, scoped, tag = 'input window, operand 0, single buffered']
    #allocation3 [shape = 's32[1]{0}', space=sflag, size = 0x4, scoped, tag = 'scoped memory for tpu_custom_call.1']
    #allocation4 [shape = 's32[1]{0}', space=sflag, size = 0x4, scoped, tag = 'scoped memory for tpu_custom_call.1']
    #allocation5 [shape = 'u8[8192]{0}', space=vmem, size = 0x2000, scoped, tag = 'output window, operand 0, single buffered']
    %8 = vsyncpa [#allocation3], 0
    %9 = vsyncpa [#allocation4], 0
    // Predicated region
    $region2: #{tpu_custom_call.1} parent=1 // pred_check
      _
    $region3: #{tpu_custom_call.1} parent=1 // pred_check_branch
      %11 = sbr.rel (0) target = $region5
    $region4: #{tpu_custom_call.1} parent=1 // pred_region
      %s13 = ssub.s32 256, 256
      %14 = vsyncadd [#allocation3], %s13
      %s15 = sshll.u32 [#allocation2], 4
      %s16 = int_to_ptr.vmem [resolvable:$true] %s15
      %21 = dma.hbm_to_vmem [thread:$0]  %s0, 256, %s16, [#allocation3], 128, 128, 8
    $region5: #{tpu_custom_call.1} parent=1 // pred_fallthru
      _
    // Predicated region
    $region6: #{tpu_custom_call.1} parent=1 // pred_check
      _
    $region7: #{tpu_custom_call.1} parent=1 // pred_check_branch
      %23 = sbr.rel (0) target = $region9
    $region8: #{tpu_custom_call.1} parent=1 // pred_region
      _
    $region9: #{tpu_custom_call.1} parent=1 // pred_fallthru
      _
    // Predicated region
    $region10: #{tpu_custom_call.1} parent=1 // pred_check
      _
    $region11: #{tpu_custom_call.1} parent=1 // pred_check_branch
      %25 = sbr.rel (0) target = $region13
    $region12: #{tpu_custom_call.1} parent=1 // pred_region
      _
    $region13: #{tpu_custom_call.1} parent=1 // pred_fallthru
      _
    // Predicated region
    $region14: #{tpu_custom_call.1} parent=1 // pred_check
      _
    $region15: #{tpu_custom_call.1} parent=1 // pred_check_branch
      %27 = sbr.rel (0) target = $region17
    $region16: #{tpu_custom_call.1} parent=1 // pred_region
      %28 = dma.done [#allocation3], 256
    $region17: #{tpu_custom_call.1} parent=1 // pred_fallthru
      _
    %v29 = vld [vmem:[#allocation2] sm:$0xff]
    %v30 = vld [vmem:[#allocation2 + $0x8] sm:$0xff]
    %v31 = vld [vmem:[%s1] sm:$0x1]
    %v33 = vlaneseq
    %v34 = vshrl.u32 %v33, 7
    %v35 = vsub.s32 0, %v34
    %v36 = vrot.slane %v31, %v35
    %v38 = vsub.f32 %v29, %v36
    %v39 = vsub.f32 %v30, %v36
    %v40 = vld [vmem:[%s2] sm:$0x1]
    %v42 = vlaneseq
    %v43 = vshrl.u32 %v42, 7
    %v44 = vsub.s32 0, %v43
    %v45 = vrot.slane %v40, %v44
    %v47 = vmul.f32 %v38, %v45
    %v48 = vmul.f32 %v39, %v45
    %vm49 = vcmask 785408
    %50 = vst.msk [vmem:[#allocation5] sm:$0xff] %vm49, %v47
    %51 = vst.msk [vmem:[#allocation5 + $0x8] sm:$0xff] %vm49, %v48
    // Predicated region
    $region18: #{tpu_custom_call.1} parent=1 // pred_check
      _
    $region19: #{tpu_custom_call.1} parent=1 // pred_check_branch
      %53 = sbr.rel (0) target = $region21
    $region20: #{tpu_custom_call.1} parent=1 // pred_region
      %s55 = ssub.s32 256, 256
      %56 = vsyncadd [#allocation4], %s55
      %s57 = sshll.u32 [#allocation5], 4
      %s58 = int_to_ptr.vmem [resolvable:$true] %s57
      %63 = dma.vmem_to_hbm [thread:$0]  %s58, 256, %s3, [#allocation4], 128, 128, 8
    $region21: #{tpu_custom_call.1} parent=1 // pred_fallthru
      _
    // Predicated region
    $region22: #{tpu_custom_call.1} parent=1 // pred_check
      _
    $region23: #{tpu_custom_call.1} parent=1 // pred_check_branch
      %65 = sbr.rel (0) target = $region25
    $region24: #{tpu_custom_call.1} parent=1 // pred_region
      %66 = dma.done [#allocation4], 256
    $region25: #{tpu_custom_call.1} parent=1 // pred_fallthru
      _
    %67 = vsyncpa [#allocation3], 1
    %68 = vsyncpa [#allocation4], 1

</llo_original>
